<compile_context>
chip_gen: v6e
topology: v6e:2x2x1
jax: 0.10.0
libtpu: 0.0.40
codegen_flags: <defaults>
</compile_context>

<pallas_src>
import jax
import jax.numpy as jnp
from jax.experimental import pallas as pl
from jax.experimental.pallas import tpu as pltpu


def _round_up(n, m):
    return ((n + m - 1) // m) * m


def _cdiv(a, b):
    return (a + b - 1) // b


def _mlp_kernel(x_ref, w1_ref, b1_ref, w2_ref, b2_ref, o_ref, acc_ref):
    """One (batch-tile, k-tile) grid step of relu(x@W1+b1)@W2+b2."""
    k = pl.program_id(1)

    @pl.when(k == 0)
    def _():
        acc_ref[...] = jnp.zeros_like(acc_ref)

    # f32 -> bf16 cast in VMEM: x is read from HBM exactly once at 4 B/elem
    # instead of 8 B/elem with a separate host-side pre-cast pass.
    x = x_ref[...].astype(jnp.bfloat16)
    acc_ref[...] += jnp.dot(x, w1_ref[...], preferred_element_type=jnp.float32)

    @pl.when(k == pl.num_programs(1) - 1)
    def _():
        h = jnp.maximum(acc_ref[...] + b1_ref[...], 0.0).astype(jnp.bfloat16)
        o = jnp.dot(h, w2_ref[...], preferred_element_type=jnp.float32) + b2_ref[...]
        o_ref[...] = o.astype(o_ref.dtype)


def _vmem_bytes(tb, tk, hp, cp, out_itemsize):
    # BlockSpec pipelining double-buffers every operand (weights too, even
    # with a constant index_map); the accumulator scratch is single-buffered.
    return (2 * tb * tk * 4          # x tiles (f32)
            + 2 * tk * hp * 2        # W1 k-tiles (bf16)
            + 2 * hp * cp * 2        # W2 (bf16, resident)
            + 2 * (hp + cp) * 4      # biases (f32)
            + 2 * tb * cp * out_itemsize
            + tb * hp * 4)           # f32 accumulator scratch


def make_wrapped_model(w1, b1, w2, b2, *, tb=1024, tk=1024,
                       kernel_out_dtype=jnp.bfloat16):
    """Build the WrappedModel-equivalent forward.  Weights are padded/cast once."""
    w1 = jnp.asarray(w1, jnp.float32)
    w2 = jnp.asarray(w2, jnp.float32)
    # Normalize 1-D or (1, N) biases explicitly (review correctness note).
    b1 = jnp.asarray(b1, jnp.float32).reshape(1, -1)
    b2 = jnp.asarray(b2, jnp.float32).reshape(1, -1)

    D, H = w1.shape
    H2, C = w2.shape
    assert H2 == H and b1.shape[1] == H and b2.shape[1] == C

    Hp = _round_up(H, 128)
    Cp = _round_up(C, 128)
    TK = min(_round_up(tk, 128), _round_up(D, 128))   # K (feature) tile
    Dp = _round_up(D, TK)
    nk = Dp // TK

    # Pad + cast weights ONCE (cached across SHAP evaluations).
    w1_p = jnp.pad(w1, ((0, Dp - D), (0, Hp - H))).astype(jnp.bfloat16)
    b1_p = jnp.pad(b1, ((0, 0), (0, Hp - H)))
    w2_p = jnp.pad(w2, ((0, Hp - H), (0, Cp - C))).astype(jnp.bfloat16)
    b2_p = jnp.pad(b2, ((0, 0), (0, Cp - C)))

    out_isize = jnp.dtype(kernel_out_dtype).itemsize

    # Clamp batch tile so the double-buffered working set stays inside a
    # conservative budget (v5e's 16 MiB default scoped VMEM is the tightest).
    VMEM_BUDGET = 12 * 1024 * 1024
    tb_cap = max(8, _round_up(tb, 8))
    while tb_cap > 8 and _vmem_bytes(tb_cap, TK, Hp, Cp, out_isize) > VMEM_BUDGET:
        tb_cap = max(8, (tb_cap // 2 // 8) * 8)
    vmem_limit = int(min(48 << 20,
                         max(32 << 20,
                             _vmem_bytes(tb_cap, TK, Hp, Cp, out_isize) * 5 // 4)))

    @jax.jit
    def forward(x):
        # WrappedModel.forward: cast input to float32, run the base model.
        x = jnp.asarray(x, jnp.float32)
        B = x.shape[0]
        x2d = x.reshape(B, -1)
        if x2d.shape[1] != D:
            raise ValueError(f"expected {D} features, got {x2d.shape[1]}")

        # Batch tiling: minimise padding waste; keep >=2 tiles when B >= 16
        # so the "parallel" axis feeds both TensorCores on v7x.
        B8 = _round_up(B, 8)
        n_tiles = _cdiv(B8, tb_cap)
        if n_tiles == 1 and B8 >= 16:
            n_tiles = 2
        TB = _round_up(_cdiv(B, n_tiles), 8)
        Bp = n_tiles * TB

        # Fast path: no copy of x at all when it is already tile-aligned.
        if x2d.shape != (Bp, Dp):
            x2d = jnp.pad(x2d, ((0, Bp - B), (0, Dp - D)))

        out = pl.pallas_call(
            _mlp_kernel,
            out_shape=jax.ShapeDtypeStruct((Bp, Cp), kernel_out_dtype),
            grid=(n_tiles, nk),
            in_specs=[
                pl.BlockSpec((TB, TK), lambda i, k: (i, k)),   # x streams
                pl.BlockSpec((TK, Hp), lambda i, k: (k, 0)),   # W1 k-tiles
                pl.BlockSpec((1, Hp), lambda i, k: (0, 0)),    # b1 resident
                pl.BlockSpec((Hp, Cp), lambda i, k: (0, 0)),   # W2 resident
                pl.BlockSpec((1, Cp), lambda i, k: (0, 0)),    # b2 resident
            ],
            out_specs=pl.BlockSpec((TB, Cp), lambda i, k: (i, 0)),
            scratch_shapes=[pltpu.VMEM((TB, Hp), jnp.float32)],
            compiler_params=pltpu.CompilerParams(
                dimension_semantics=("parallel", "arbitrary"),
                vmem_limit_bytes=vmem_limit),
        )(x2d, w1_p, b1_p, w2_p, b2_p)

        # Slice away batch/class padding; return float32 like WrappedModel.
        return out[:B, :C].astype(jnp.float32)

    return forward


if __name__ == "__main__":
    # Deterministic synthetic base-model parameters (small image classifier
    # wrapped for SHAP).
    B, Cin, Himg, Wimg = 2, 4, 16, 16
    D = Cin * Himg * Wimg          # 1024
    Hid = 64
    Ncls = 10

    key = jax.random.PRNGKey(0)
    kx, k1, k2, k3, k4, kx2 = jax.random.split(key, 6)

    x = jax.random.normal(kx, (B, Cin, Himg, Wimg), dtype=jnp.float32)
    w1 = jax.random.normal(k1, (D, Hid), dtype=jnp.float32) * (1.0 / jnp.sqrt(D))
    b1 = jax.random.normal(k2, (Hid,), dtype=jnp.float32) * 0.01     # 1-D bias
    w2 = jax.random.normal(k3, (Hid, Ncls), dtype=jnp.float32) * (1.0 / jnp.sqrt(Hid))
    b2 = jax.random.normal(k4, (Ncls,), dtype=jnp.float32) * 0.01

    forward = make_wrapped_model(w1, b1, w2, b2)

    def ref_fn(xin):
        # Plain-JAX reference with the same bf16 rounding points as the kernel.
        x2d = xin.reshape(xin.shape[0], -1)
        xb = x2d.astype(jnp.bfloat16).astype(jnp.float32)
        w1b = w1.astype(jnp.bfloat16).astype(jnp.float32)
        w2b = w2.astype(jnp.bfloat16).astype(jnp.float32)
        h = jnp.maximum(xb @ w1b + b1[None, :], 0.0)
        h = h.astype(jnp.bfloat16).astype(jnp.float32)
        o = h @ w2b + b2[None, :]
        return o.astype(jnp.bfloat16).astype(jnp.float32)

    logits = forward(x)
    jax.block_until_ready(logits)
    assert logits.shape == (B, Ncls)
    assert logits.dtype == jnp.float32
    assert jnp.allclose(logits, ref_fn(x), atol=3e-2, rtol=3e-2)

    # Second call with an unaligned batch exercises the multi-tile
    # ("parallel") path and the pad-only-when-needed branch.
    x2 = jax.random.normal(kx2, (20, Cin, Himg, Wimg), dtype=jnp.float32)
    logits2 = forward(x2)
    jax.block_until_ready(logits2)
    assert logits2.shape == (20, Ncls)
    assert jnp.allclose(logits2, ref_fn(x2), atol=3e-2, rtol=3e-2)

    print("KERNEL_OK")
</pallas_src>

<mosaic_0001>
module attributes {stable_mosaic.version = 11 : i64} {
  func.func @_mlp_kernel(%arg0: i32, %arg1: i32, %arg2: memref<8x1024xf32, #tpu.memory_space<vmem>>, %arg3: memref<1024x128xbf16, #tpu.memory_space<vmem>>, %arg4: memref<1x128xf32, #tpu.memory_space<vmem>>, %arg5: memref<128x128xbf16, #tpu.memory_space<vmem>>, %arg6: memref<1x128xf32, #tpu.memory_space<vmem>>, %arg7: memref<8x128xbf16, #tpu.memory_space<vmem>>, %arg8: memref<8x128xf32, #tpu.memory_space<vmem>>) attributes {dimension_semantics = [#tpu.dimension_semantics<parallel>, #tpu.dimension_semantics<arbitrary>], iteration_bounds = array<i64: 1, 1>, scalar_prefetch = 0 : i64, scratch_operands = 1 : i64, tpu.core_type = #tpu.core_type<tc>, window_params = [{transform_indices = @transform_0, window_bounds = array<i64: 8, 1024>}, {transform_indices = @transform_1, window_bounds = array<i64: 1024, 128>}, {pipeline_mode = #tpu.pipeline_mode<synchronous>, transform_indices = @transform_2, window_bounds = array<i64: 1, 128>}, {pipeline_mode = #tpu.pipeline_mode<synchronous>, transform_indices = @transform_3, window_bounds = array<i64: 128, 128>}, {pipeline_mode = #tpu.pipeline_mode<synchronous>, transform_indices = @transform_4, window_bounds = array<i64: 1, 128>}, {transform_indices = @transform_5, window_bounds = array<i64: 8, 128>}]} {
    %c0_i32 = arith.constant 0 : i32
    %0 = arith.cmpi eq, %arg1, %c0_i32 : i32
    %1 = arith.extui %0 : i1 to i32
    %c0_i32_0 = arith.constant 0 : i32
    %2 = arith.cmpi ne, %1, %c0_i32_0 : i32
    scf.if %2 {
      %cst_10 = arith.constant 0.000000e+00 : f32
      %13 = vector.broadcast %cst_10 : f32 to vector<8x128xf32>
      %c0_11 = arith.constant 0 : index
      %c0_12 = arith.constant 0 : index
      %14 = vector.load %arg8[%c0_11, %c0_12] : memref<8x128xf32, #tpu.memory_space<vmem>>, vector<8x128xf32>
      tpu.vector_store %arg8[%c0_11, %c0_12], %13 {strides = array<i32>} : memref<8x128xf32, #tpu.memory_space<vmem>>, vector<8x128xf32>,
    } else {
    }
    %c0 = arith.constant 0 : index
    %c0_1 = arith.constant 0 : index
    %3 = vector.load %arg2[%c0, %c0_1] : memref<8x1024xf32, #tpu.memory_space<vmem>>, vector<8x1024xf32>
    %4 = arith.truncf %3 : vector<8x1024xf32> to vector<8x1024xbf16>
    %c0_2 = arith.constant 0 : index
    %c0_3 = arith.constant 0 : index
    %5 = vector.load %arg8[%c0_2, %c0_3] : memref<8x128xf32, #tpu.memory_space<vmem>>, vector<8x128xf32>
    %c0_4 = arith.constant 0 : index
    %c0_5 = arith.constant 0 : index
    %6 = vector.load %arg3[%c0_4, %c0_5] : memref<1024x128xbf16, #tpu.memory_space<vmem>>, vector<1024x128xbf16>
    %cst = arith.constant dense<0.000000e+00> : vector<8x128xf32>
    %7 = tpu.matmul %4, %6, %cst {dimension_numbers = #tpu.dot_dimension_numbers<[1], [0], [0], [1], [0, 0, 1, 1], [], []>} : vector<8x1024xbf16>, vector<1024x128xbf16>, vector<8x128xf32> -> vector<8x128xf32>
    %8 = arith.addf %5, %7 : vector<8x128xf32>
    %c0_6 = arith.constant 0 : index
    %c0_7 = arith.constant 0 : index
    %9 = vector.load %arg8[%c0_6, %c0_7] : memref<8x128xf32, #tpu.memory_space<vmem>>, vector<8x128xf32>
    tpu.vector_store %arg8[%c0_6, %c0_7], %8 {strides = array<i32>} : memref<8x128xf32, #tpu.memory_space<vmem>>, vector<8x128xf32>,
    %c0_i32_8 = arith.constant 0 : i32
    %10 = arith.cmpi eq, %arg1, %c0_i32_8 : i32
    %11 = arith.extui %10 : i1 to i32
    %c0_i32_9 = arith.constant 0 : i32
    %12 = arith.cmpi ne, %11, %c0_i32_9 : i32
    scf.if %12 {
      %c0_10 = arith.constant 0 : index
      %c0_11 = arith.constant 0 : index
      %13 = vector.load %arg8[%c0_10, %c0_11] : memref<8x128xf32, #tpu.memory_space<vmem>>, vector<8x128xf32>
      %c0_12 = arith.constant 0 : index
      %c0_13 = arith.constant 0 : index
      %14 = vector.load %arg4[%c0_12, %c0_13] : memref<1x128xf32, #tpu.memory_space<vmem>>, vector<1x128xf32>
      %15 = vector.broadcast %14 : vector<1x128xf32> to vector<8x128xf32>
      %16 = arith.addf %13, %15 : vector<8x128xf32>
      %cst_14 = arith.constant 0.000000e+00 : f32
      %17 = vector.broadcast %cst_14 : f32 to vector<8x128xf32>
      %18 = arith.maximumf %16, %17 : vector<8x128xf32>
      %19 = arith.truncf %18 : vector<8x128xf32> to vector<8x128xbf16>
      %c0_15 = arith.constant 0 : index
      %c0_16 = arith.constant 0 : index
      %20 = vector.load %arg5[%c0_15, %c0_16] : memref<128x128xbf16, #tpu.memory_space<vmem>>, vector<128x128xbf16>
      %cst_17 = arith.constant dense<0.000000e+00> : vector<8x128xf32>
      %21 = tpu.matmul %19, %20, %cst_17 {dimension_numbers = #tpu.dot_dimension_numbers<[1], [0], [0], [1], [0, 0, 1, 1], [], []>} : vector<8x128xbf16>, vector<128x128xbf16>, vector<8x128xf32> -> vector<8x128xf32>
      %c0_18 = arith.constant 0 : index
      %c0_19 = arith.constant 0 : index
      %22 = vector.load %arg6[%c0_18, %c0_19] : memref<1x128xf32, #tpu.memory_space<vmem>>, vector<1x128xf32>
      %23 = vector.broadcast %22 : vector<1x128xf32> to vector<8x128xf32>
      %24 = arith.addf %21, %23 : vector<8x128xf32>
      %25 = arith.truncf %24 : vector<8x128xf32> to vector<8x128xbf16>
      %c0_20 = arith.constant 0 : index
      %c0_21 = arith.constant 0 : index
      %26 = vector.load %arg7[%c0_20, %c0_21] : memref<8x128xbf16, #tpu.memory_space<vmem>>, vector<8x128xbf16>
      tpu.vector_store %arg7[%c0_20, %c0_21], %25 {strides = array<i32>} : memref<8x128xbf16, #tpu.memory_space<vmem>>, vector<8x128xbf16>,
    } else {
    }
    return
  }
  func.func @transform_0(%arg0: i32, %arg1: i32) -> (i32, i32) {
    %c0_i32 = arith.constant 0 : i32
    return %arg0, %arg1 : i32, i32
  }
  func.func @transform_1(%arg0: i32, %arg1: i32) -> (i32, i32) {
    %c0_i32 = arith.constant 0 : i32
    %c0_i32_0 = arith.constant 0 : i32
    return %arg1, %c0_i32 : i32, i32
  }
  func.func @transform_2(%arg0: i32, %arg1: i32) -> (i32, i32) {
    %c0_i32 = arith.constant 0 : i32
    %c0_i32_0 = arith.constant 0 : i32
    %c0_i32_1 = arith.constant 0 : i32
    return %c0_i32, %c0_i32_0 : i32, i32
  }
  func.func @transform_3(%arg0: i32, %arg1: i32) -> (i32, i32) {
    %c0_i32 = arith.constant 0 : i32
    %c0_i32_0 = arith.constant 0 : i32
    %c0_i32_1 = arith.constant 0 : i32
    return %c0_i32, %c0_i32_0 : i32, i32
  }
  func.func @transform_4(%arg0: i32, %arg1: i32) -> (i32, i32) {
    %c0_i32 = arith.constant 0 : i32
    %c0_i32_0 = arith.constant 0 : i32
    %c0_i32_1 = arith.constant 0 : i32
    return %c0_i32, %c0_i32_0 : i32, i32
  }
  func.func @transform_5(%arg0: i32, %arg1: i32) -> (i32, i32) {
    %c0_i32 = arith.constant 0 : i32
    %c0_i32_0 = arith.constant 0 : i32
    return %arg0, %c0_i32 : i32, i32
  }
}

</mosaic_0001>

<llo_original>
// kernel: forward.1
$region0: #{forward.1}
  #allocation0 [shape = 'u32[]', space=smem, size = 0x4, offset = 0x4, fixed_abs, tag = 'smem constant byte address 0x4 - core index']
  #allocation1 [shape = 'u32[144,128]{1,0:T(1,128)}', space=vmem, size = 0x12000, scoped, tag = 'internal scratch']
  #allocation2 [shape = 'f32[8,128]{1,0:T(8,128)}', space=vmem, size = 0x1000, scoped, tag = 'scratch operand']
  %s0 = inlined_call_operand.vmem [shape: f32[8,1024], index: 0, kind: input, shape index: {}]
  %s1 = inlined_call_operand.hbm [shape: bf16[1024,128], index: 1, kind: input, shape index: {}]
  %s2 = inlined_call_operand.vmem [shape: f32[1,128], index: 2, kind: input, shape index: {}]
  %s3 = inlined_call_operand.vmem [shape: bf16[128,128], index: 3, kind: input, shape index: {}]
  %s4 = inlined_call_operand.vmem [shape: f32[1,128], index: 4, kind: input, shape index: {}]
  %s5 = inlined_call_operand.vmem [shape: bf16[8,128], index: 5, kind: output, shape index: {}]
  %s6 = sld [smem:[#allocation0]]
  $region42: #{forward.1} parent=0
    _
  %s8 = ssub.s32 1, %s6
  %s9 = scalar_select 0, %s8, %s6
  $region1: #{forward.1} parent=0
    #allocation3 [shape = 'u8[262144]{0}', space=vmem, size = 0x40000, scoped, tag = 'input window, operand 1, single buffered']
    #allocation4 [shape = 's32[1]{0}', space=sflag, size = 0x4, scoped, tag = 'scoped memory for forward.1']
    %10 = vsyncpa [#allocation4], 0
    // Predicated region
    $region2: #{forward.1} parent=1 // pred_check
      _
    $region3: #{forward.1} parent=1 // pred_check_branch
      %12 = sbr.rel (0) target = $region5
    $region4: #{forward.1} parent=1 // pred_region
      _
    $region5: #{forward.1} parent=1 // pred_fallthru
      _
    // Predicated region
    $region6: #{forward.1} parent=1 // pred_check
      _
    $region7: #{forward.1} parent=1 // pred_check_branch
      %14 = sbr.rel (0) target = $region9
    $region8: #{forward.1} parent=1 // pred_region
      %s16 = ssub.s32 8192, 8192
      %17 = vsyncadd [#allocation4], %s16
      %s18 = sshll.u32 [#allocation3], 4
      %s19 = int_to_ptr.vmem [resolvable:$true] %s18
      %24 = dma.hbm_to_vmem [thread:$0]  %s1, 8192, %s19, [#allocation4], 64, 64, 4
    $region9: #{forward.1} parent=1 // pred_fallthru
      _
    // Predicated region
    $region10: #{forward.1} parent=1 // pred_check
      _
    $region11: #{forward.1} parent=1 // pred_check_branch
      %26 = sbr.rel (0) target = $region13
    $region12: #{forward.1} parent=1 // pred_region
      _
    $region13: #{forward.1} parent=1 // pred_fallthru
      _
    // Predicated region
    $region14: #{forward.1} parent=1 // pred_check
      _
    $region15: #{forward.1} parent=1 // pred_check_branch
      %28 = sbr.rel (0) target = $region17
    $region16: #{forward.1} parent=1 // pred_region
      _
    $region17: #{forward.1} parent=1 // pred_fallthru
      _
    // Predicated region
    $region18: #{forward.1} parent=1 // pred_check
      _
    $region19: #{forward.1} parent=1 // pred_check_branch
      %30 = sbr.rel (0) target = $region21
    $region20: #{forward.1} parent=1 // pred_region
      _
    $region21: #{forward.1} parent=1 // pred_fallthru
      _
    // Predicated region
    $region22: #{forward.1} parent=1 // pred_check
      _
    $region23: #{forward.1} parent=1 // pred_check_branch
      %32 = sbr.rel (0) target = $region25
    $region24: #{forward.1} parent=1 // pred_region
      %33 = dma.done [#allocation4], 8192
    $region25: #{forward.1} parent=1 // pred_fallthru
      _
    %p35 = scmp.eq.s32.totalorder 0, 0
    // Predicated region
    $region26: #{forward.1} parent=1 // pred_check
      %p36 = pneg %p35
    $region27: #{forward.1} parent=1 // pred_check_branch
      %38 = sbr.rel (%p36) target = $region29
    $region28: #{forward.1} parent=1 // pred_region
      %39 = vst [vmem:[#allocation2] sm:$0xff] 0.0
    $region29: #{forward.1} parent=1 // pred_fallthru
      _
    %v40 = vld [vmem:[%s0] sm:$0xff]
    %v41 = vld [vmem:[%s0 + $0x8] sm:$0xff]
    %v42 = vld [vmem:[%s0 + $0x10] sm:$0xff]
    %v43 = vld [vmem:[%s0 + $0x18] sm:$0xff]
    %v44 = vld [vmem:[%s0 + $0x20] sm:$0xff]
    %v45 = vld [vmem:[%s0 + $0x28] sm:$0xff]
    %v46 = vld [vmem:[%s0 + $0x30] sm:$0xff]
    %v47 = vld [vmem:[%s0 + $0x38] sm:$0xff]
    %v48 = vpack.c.bf16 %v40, %v40
    %v49 = vpack.c.bf16 %v41, %v41
    %v50 = vpack.c.bf16 %v42, %v42
    %v51 = vpack.c.bf16 %v43, %v43
    %v52 = vpack.c.bf16 %v44, %v44
    %v53 = vpack.c.bf16 %v45, %v45
    %v54 = vpack.c.bf16 %v46, %v46
    %v55 = vpack.c.bf16 %v47, %v47
    %v56 = vld [vmem:[#allocation2] sm:$0xff]
    %v57 = vld [vmem:[#allocation3] sm:$0xf]
    %v58 = vld [vmem:[#allocation3 + $0x4] sm:$0xf]
    %v59 = vld [vmem:[#allocation3 + $0x8] sm:$0xf]
    %v60 = vld [vmem:[#allocation3 + $0xc] sm:$0xf]
    %v61 = vld [vmem:[#allocation3 + $0x10] sm:$0xf]
    %v62 = vld [vmem:[#allocation3 + $0x14] sm:$0xf]
    %v63 = vld [vmem:[#allocation3 + $0x18] sm:$0xf]
    %v64 = vld [vmem:[#allocation3 + $0x1c] sm:$0xf]
    %v65 = vld [vmem:[#allocation3 + $0x20] sm:$0xf]
    %v66 = vld [vmem:[#allocation3 + $0x24] sm:$0xf]
    %v67 = vld [vmem:[#allocation3 + $0x28] sm:$0xf]
    %v68 = vld [vmem:[#allocation3 + $0x2c] sm:$0xf]
    %v69 = vld [vmem:[#allocation3 + $0x30] sm:$0xf]
    %v70 = vld [vmem:[#allocation3 + $0x34] sm:$0xf]
    %v71 = vld [vmem:[#allocation3 + $0x38] sm:$0xf]
    %v72 = vld [vmem:[#allocation3 + $0x3c] sm:$0xf]
    %v73 = vld [vmem:[#allocation3 + $0x40] sm:$0xf]
    %v74 = vld [vmem:[#allocation3 + $0x44] sm:$0xf]
    %v75 = vld [vmem:[#allocation3 + $0x48] sm:$0xf]
    %v76 = vld [vmem:[#allocation3 + $0x4c] sm:$0xf]
    %v77 = vld [vmem:[#allocation3 + $0x50] sm:$0xf]
    %v78 = vld [vmem:[#allocation3 + $0x54] sm:$0xf]
    %v79 = vld [vmem:[#allocation3 + $0x58] sm:$0xf]
    %v80 = vld [vmem:[#allocation3 + $0x5c] sm:$0xf]
    %v81 = vld [vmem:[#allocation3 + $0x60] sm:$0xf]
    %v82 = vld [vmem:[#allocation3 + $0x64] sm:$0xf]
    %v83 = vld [vmem:[#allocation3 + $0x68] sm:$0xf]
    %v84 = vld [vmem:[#allocation3 + $0x6c] sm:$0xf]
    %v85 = vld [vmem:[#allocation3 + $0x70] sm:$0xf]
    %v86 = vld [vmem:[#allocation3 + $0x74] sm:$0xf]
    %v87 = vld [vmem:[#allocation3 + $0x78] sm:$0xf]
    %v88 = vld [vmem:[#allocation3 + $0x7c] sm:$0xf]
    %v89 = vld [vmem:[#allocation3 + $0x80] sm:$0xf]
    %v90 = vld [vmem:[#allocation3 + $0x84] sm:$0xf]
    %v91 = vld [vmem:[#allocation3 + $0x88] sm:$0xf]
    %v92 = vld [vmem:[#allocation3 + $0x8c] sm:$0xf]
    %v93 = vld [vmem:[#allocation3 + $0x90] sm:$0xf]
    %v94 = vld [vmem:[#allocation3 + $0x94] sm:$0xf]
    %v95 = vld [vmem:[#allocation3 + $0x98] sm:$0xf]
    %v96 = vld [vmem:[#allocation3 + $0x9c] sm:$0xf]
    %v97 = vld [vmem:[#allocation3 + $0xa0] sm:$0xf]
    %v98 = vld [vmem:[#allocation3 + $0xa4] sm:$0xf]
    %v99 = vld [vmem:[#allocation3 + $0xa8] sm:$0xf]
    %v100 = vld [vmem:[#allocation3 + $0xac] sm:$0xf]
    %v101 = vld [vmem:[#allocation3 + $0xb0] sm:$0xf]
    %v102 = vld [vmem:[#allocation3 + $0xb4] sm:$0xf]
    %v103 = vld [vmem:[#allocation3 + $0xb8] sm:$0xf]
    %v104 = vld [vmem:[#allocation3 + $0xbc] sm:$0xf]
    %v105 = vld [vmem:[#allocation3 + $0xc0] sm:$0xf]
    %v106 = vld [vmem:[#allocation3 + $0xc4] sm:$0xf]
    %v107 = vld [vmem:[#allocation3 + $0xc8] sm:$0xf]
    %v108 = vld [vmem:[#allocation3 + $0xcc] sm:$0xf]
    %v109 = vld [vmem:[#allocation3 + $0xd0] sm:$0xf]
    %v110 = vld [vmem:[#allocation3 + $0xd4] sm:$0xf]
    %v111 = vld [vmem:[#allocation3 + $0xd8] sm:$0xf]
    %v112 = vld [vmem:[#allocation3 + $0xdc] sm:$0xf]
    %v113 = vld [vmem:[#allocation3 + $0xe0] sm:$0xf]
    %v114 = vld [vmem:[#allocation3 + $0xe4] sm:$0xf]
    %v115 = vld [vmem:[#allocation3 + $0xe8] sm:$0xf]
    %v116 = vld [vmem:[#allocation3 + $0xec] sm:$0xf]
    %v117 = vld [vmem:[#allocation3 + $0xf0] sm:$0xf]
    %v118 = vld [vmem:[#allocation3 + $0xf4] sm:$0xf]
    %v119 = vld [vmem:[#allocation3 + $0xf8] sm:$0xf]
    %v120 = vld [vmem:[#allocation3 + $0xfc] sm:$0xf]
    %v121 = vld [vmem:[#allocation3 + $0x100] sm:$0xf]
    %v122 = vld [vmem:[#allocation3 + $0x104] sm:$0xf]
    %v123 = vld [vmem:[#allocation3 + $0x108] sm:$0xf]
    %v124 = vld [vmem:[#allocation3 + $0x10c] sm:$0xf]
    %v125 = vld [vmem:[#allocation3 + $0x110] sm:$0xf]
    %v126 = vld [vmem:[#allocation3 + $0x114] sm:$0xf]
    %v127 = vld [vmem:[#allocation3 + $0x118] sm:$0xf]
    %v128 = vld [vmem:[#allocation3 + $0x11c] sm:$0xf]
    %v129 = vld [vmem:[#allocation3 + $0x120] sm:$0xf]
    %v130 = vld [vmem:[#allocation3 + $0x124] sm:$0xf]
    %v131 = vld [vmem:[#allocation3 + $0x128] sm:$0xf]
    %v132 = vld [vmem:[#allocation3 + $0x12c] sm:$0xf]
    %v133 = vld [vmem:[#allocation3 + $0x130] sm:$0xf]
    %v134 = vld [vmem:[#allocation3 + $0x134] sm:$0xf]
    %v135 = vld [vmem:[#allocation3 + $0x138] sm:$0xf]
    %v136 = vld [vmem:[#allocation3 + $0x13c] sm:$0xf]
    %v137 = vld [vmem:[#allocation3 + $0x140] sm:$0xf]
    %v138 = vld [vmem:[#allocation3 + $0x144] sm:$0xf]
    %v139 = vld [vmem:[#allocation3 + $0x148] sm:$0xf]
    %v140 = vld [vmem:[#allocation3 + $0x14c] sm:$0xf]
    %v141 = vld [vmem:[#allocation3 + $0x150] sm:$0xf]
    %v142 = vld [vmem:[#allocation3 + $0x154] sm:$0xf]
    %v143 = vld [vmem:[#allocation3 + $0x158] sm:$0xf]
    %v144 = vld [vmem:[#allocation3 + $0x15c] sm:$0xf]
    %v145 = vld [vmem:[#allocation3 + $0x160] sm:$0xf]
    %v146 = vld [vmem:[#allocation3 + $0x164] sm:$0xf]
    %v147 = vld [vmem:[#allocation3 + $0x168] sm:$0xf]
    %v148 = vld [vmem:[#allocation3 + $0x16c] sm:$0xf]
    %v149 = vld [vmem:[#allocation3 + $0x170] sm:$0xf]
    %v150 = vld [vmem:[#allocation3 + $0x174] sm:$0xf]
    %v151 = vld [vmem:[#allocation3 + $0x178] sm:$0xf]
    %v152 = vld [vmem:[#allocation3 + $0x17c] sm:$0xf]
    %v153 = vld [vmem:[#allocation3 + $0x180] sm:$0xf]
    %v154 = vld [vmem:[#allocation3 + $0x184] sm:$0xf]
    %v155 = vld [vmem:[#allocation3 + $0x188] sm:$0xf]
    %v156 = vld [vmem:[#allocation3 + $0x18c] sm:$0xf]
    %v157 = vld [vmem:[#allocation3 + $0x190] sm:$0xf]
    %v158 = vld [vmem:[#allocation3 + $0x194] sm:$0xf]
    %v159 = vld [vmem:[#allocation3 + $0x198] sm:$0xf]
    %v160 = vld [vmem:[#allocation3 + $0x19c] sm:$0xf]
    %v161 = vld [vmem:[#allocation3 + $0x1a0] sm:$0xf]
    %v162 = vld [vmem:[#allocation3 + $0x1a4] sm:$0xf]
    %v163 = vld [vmem:[#allocation3 + $0x1a8] sm:$0xf]
    %v164 = vld [vmem:[#allocation3 + $0x1ac] sm:$0xf]
    %v165 = vld [vmem:[#allocation3 + $0x1b0] sm:$0xf]
    %v166 = vld [vmem:[#allocation3 + $0x1b4] sm:$0xf]
    %v167 = vld [vmem:[#allocation3 + $0x1b8] sm:$0xf]
    %v168 = vld [vmem:[#allocation3 + $0x1bc] sm:$0xf]
    %v169 = vld [vmem:[#allocation3 + $0x1c0] sm:$0xf]
    %v170 = vld [vmem:[#allocation3 + $0x1c4] sm:$0xf]
    %v171 = vld [vmem:[#allocation3 + $0x1c8] sm:$0xf]
    %v172 = vld [vmem:[#allocation3 + $0x1cc] sm:$0xf]
    %v173 = vld [vmem:[#allocation3 + $0x1d0] sm:$0xf]
    %v174 = vld [vmem:[#allocation3 + $0x1d4] sm:$0xf]
    %v175 = vld [vmem:[#allocation3 + $0x1d8] sm:$0xf]
    %v176 = vld [vmem:[#allocation3 + $0x1dc] sm:$0xf]
    %v177 = vld [vmem:[#allocation3 + $0x1e0] sm:$0xf]
    %v178 = vld [vmem:[#allocation3 + $0x1e4] sm:$0xf]
    %v179 = vld [vmem:[#allocation3 + $0x1e8] sm:$0xf]
    %v180 = vld [vmem:[#allocation3 + $0x1ec] sm:$0xf]
    %v181 = vld [vmem:[#allocation3 + $0x1f0] sm:$0xf]
    %v182 = vld [vmem:[#allocation3 + $0x1f4] sm:$0xf]
    %v183 = vld [vmem:[#allocation3 + $0x1f8] sm:$0xf]
    %v184 = vld [vmem:[#allocation3 + $0x1fc] sm:$0xf]
    %v313 = vunpack.c.l.b16 %v57
    %v314 = vunpack.c.l.b16 %v58
    %v315 = vunpack.c.l.b16 %v59
    %v316 = vunpack.c.l.b16 %v60
    %v317 = vunpack.c.l.b16 %v61
    %v318 = vunpack.c.l.b16 %v62
    %v319 = vunpack.c.l.b16 %v63
    %v320 = vunpack.c.l.b16 %v64
    %v321 = vunpack.c.l.b16 %v65
    %v322 = vunpack.c.l.b16 %v66
    %v323 = vunpack.c.l.b16 %v67
    %v324 = vunpack.c.l.b16 %v68
    %v325 = vunpack.c.l.b16 %v69
    %v326 = vunpack.c.l.b16 %v70
    %v327 = vunpack.c.l.b16 %v71
    %v328 = vunpack.c.l.b16 %v72
    %v329 = vunpack.c.l.b16 %v73
    %v330 = vunpack.c.l.b16 %v74
    %v331 = vunpack.c.l.b16 %v75
    %v332 = vunpack.c.l.b16 %v76
    %v333 = vunpack.c.l.b16 %v77
    %v334 = vunpack.c.l.b16 %v78
    %v335 = vunpack.c.l.b16 %v79
    %v336 = vunpack.c.l.b16 %v80
    %v337 = vunpack.c.l.b16 %v81
    %v338 = vunpack.c.l.b16 %v82
    %v339 = vunpack.c.l.b16 %v83
    %v340 = vunpack.c.l.b16 %v84
    %v341 = vunpack.c.l.b16 %v85
    %v342 = vunpack.c.l.b16 %v86
    %v343 = vunpack.c.l.b16 %v87
    %v344 = vunpack.c.l.b16 %v88
    %v345 = vunpack.c.l.b16 %v89
    %v346 = vunpack.c.l.b16 %v90
    %v347 = vunpack.c.l.b16 %v91
    %v348 = vunpack.c.l.b16 %v92
    %v349 = vunpack.c.l.b16 %v93
    %v350 = vunpack.c.l.b16 %v94
    %v351 = vunpack.c.l.b16 %v95
    %v352 = vunpack.c.l.b16 %v96
    %v353 = vunpack.c.l.b16 %v97
    %v354 = vunpack.c.l.b16 %v98
    %v355 = vunpack.c.l.b16 %v99
    %v356 = vunpack.c.l.b16 %v100
    %v357 = vunpack.c.l.b16 %v101
    %v358 = vunpack.c.l.b16 %v102
    %v359 = vunpack.c.l.b16 %v103
    %v360 = vunpack.c.l.b16 %v104
    %v361 = vunpack.c.l.b16 %v105
    %v362 = vunpack.c.l.b16 %v106
    %v363 = vunpack.c.l.b16 %v107
    %v364 = vunpack.c.l.b16 %v108
    %v365 = vunpack.c.l.b16 %v109
    %v366 = vunpack.c.l.b16 %v110
    %v367 = vunpack.c.l.b16 %v111
    %v368 = vunpack.c.l.b16 %v112
    %v369 = vunpack.c.l.b16 %v113
    %v370 = vunpack.c.l.b16 %v114
    %v371 = vunpack.c.l.b16 %v115
    %v372 = vunpack.c.l.b16 %v116
    %v373 = vunpack.c.l.b16 %v117
    %v374 = vunpack.c.l.b16 %v118
    %v375 = vunpack.c.l.b16 %v119
    %v376 = vunpack.c.l.b16 %v120
    %v377 = vunpack.c.l.b16 %v121
    %v378 = vunpack.c.l.b16 %v122
    %v379 = vunpack.c.l.b16 %v123
    %v380 = vunpack.c.l.b16 %v124
    %v381 = vunpack.c.l.b16 %v125
    %v382 = vunpack.c.l.b16 %v126
    %v383 = vunpack.c.l.b16 %v127
    %v384 = vunpack.c.l.b16 %v128
    %v385 = vunpack.c.l.b16 %v129
    %v386 = vunpack.c.l.b16 %v130
    %v387 = vunpack.c.l.b16 %v131
    %v388 = vunpack.c.l.b16 %v132
    %v389 = vunpack.c.l.b16 %v133
    %v390 = vunpack.c.l.b16 %v134
    %v391 = vunpack.c.l.b16 %v135
    %v392 = vunpack.c.l.b16 %v136
    %v393 = vunpack.c.l.b16 %v137
    %v394 = vunpack.c.l.b16 %v138
    %v395 = vunpack.c.l.b16 %v139
    %v396 = vunpack.c.l.b16 %v140
    %v397 = vunpack.c.l.b16 %v141
    %v398 = vunpack.c.l.b16 %v142
    %v399 = vunpack.c.l.b16 %v143
    %v400 = vunpack.c.l.b16 %v144
    %v401 = vunpack.c.l.b16 %v145
    %v402 = vunpack.c.l.b16 %v146
    %v403 = vunpack.c.l.b16 %v147
    %v404 = vunpack.c.l.b16 %v148
    %v405 = vunpack.c.l.b16 %v149
    %v406 = vunpack.c.l.b16 %v150
    %v407 = vunpack.c.l.b16 %v151
    %v408 = vunpack.c.l.b16 %v152
    %v409 = vunpack.c.l.b16 %v153
    %v410 = vunpack.c.l.b16 %v154
    %v411 = vunpack.c.l.b16 %v155
    %v412 = vunpack.c.l.b16 %v156
    %v413 = vunpack.c.l.b16 %v157
    %v414 = vunpack.c.l.b16 %v158
    %v415 = vunpack.c.l.b16 %v159
    %v416 = vunpack.c.l.b16 %v160
    %v417 = vunpack.c.l.b16 %v161
    %v418 = vunpack.c.l.b16 %v162
    %v419 = vunpack.c.l.b16 %v163
    %v420 = vunpack.c.l.b16 %v164
    %v421 = vunpack.c.l.b16 %v165
    %v422 = vunpack.c.l.b16 %v166
    %v423 = vunpack.c.l.b16 %v167
    %v424 = vunpack.c.l.b16 %v168
    %v425 = vunpack.c.l.b16 %v169
    %v426 = vunpack.c.l.b16 %v170
    %v427 = vunpack.c.l.b16 %v171
    %v428 = vunpack.c.l.b16 %v172
    %v429 = vunpack.c.l.b16 %v173
    %v430 = vunpack.c.l.b16 %v174
    %v431 = vunpack.c.l.b16 %v175
    %v432 = vunpack.c.l.b16 %v176
    %v433 = vunpack.c.l.b16 %v177
    %v434 = vunpack.c.l.b16 %v178
    %v435 = vunpack.c.l.b16 %v179
    %v436 = vunpack.c.l.b16 %v180
    %v437 = vunpack.c.l.b16 %v181
    %v438 = vunpack.c.l.b16 %v182
    %v439 = vunpack.c.l.b16 %v183
    %v440 = vunpack.c.l.b16 %v184
    %v441 = vpack.c.b16 %v314, %v313
    %v442 = vpack.c.b16 %v316, %v315
    %v443 = vpack.c.b16 %v318, %v317
    %v444 = vpack.c.b16 %v320, %v319
    %v445 = vpack.c.b16 %v322, %v321
    %v446 = vpack.c.b16 %v324, %v323
    %v447 = vpack.c.b16 %v326, %v325
    %v448 = vpack.c.b16 %v328, %v327
    %v449 = vpack.c.b16 %v330, %v329
    %v450 = vpack.c.b16 %v332, %v331
    %v451 = vpack.c.b16 %v334, %v333
    %v452 = vpack.c.b16 %v336, %v335
    %v453 = vpack.c.b16 %v338, %v337
    %v454 = vpack.c.b16 %v340, %v339
    %v455 = vpack.c.b16 %v342, %v341
    %v456 = vpack.c.b16 %v344, %v343
    %v457 = vpack.c.b16 %v346, %v345
    %v458 = vpack.c.b16 %v348, %v347
    %v459 = vpack.c.b16 %v350, %v349
    %v460 = vpack.c.b16 %v352, %v351
    %v461 = vpack.c.b16 %v354, %v353
    %v462 = vpack.c.b16 %v356, %v355
    %v463 = vpack.c.b16 %v358, %v357
    %v464 = vpack.c.b16 %v360, %v359
    %v465 = vpack.c.b16 %v362, %v361
    %v466 = vpack.c.b16 %v364, %v363
    %v467 = vpack.c.b16 %v366, %v365
    %v468 = vpack.c.b16 %v368, %v367
    %v469 = vpack.c.b16 %v370, %v369
    %v470 = vpack.c.b16 %v372, %v371
    %v471 = vpack.c.b16 %v374, %v373
    %v472 = vpack.c.b16 %v376, %v375
    %v473 = vpack.c.b16 %v378, %v377
    %v474 = vpack.c.b16 %v380, %v379
    %v475 = vpack.c.b16 %v382, %v381
    %v476 = vpack.c.b16 %v384, %v383
    %v477 = vpack.c.b16 %v386, %v385
    %v478 = vpack.c.b16 %v388, %v387
    %v479 = vpack.c.b16 %v390, %v389
    %v480 = vpack.c.b16 %v392, %v391
    %v481 = vpack.c.b16 %v394, %v393
    %v482 = vpack.c.b16 %v396, %v395
    %v483 = vpack.c.b16 %v398, %v397
    %v484 = vpack.c.b16 %v400, %v399
    %v485 = vpack.c.b16 %v402, %v401
    %v486 = vpack.c.b16 %v404, %v403
    %v487 = vpack.c.b16 %v406, %v405
    %v488 = vpack.c.b16 %v408, %v407
    %v489 = vpack.c.b16 %v410, %v409
    %v490 = vpack.c.b16 %v412, %v411
    %v491 = vpack.c.b16 %v414, %v413
    %v492 = vpack.c.b16 %v416, %v415
    %v493 = vpack.c.b16 %v418, %v417
    %v494 = vpack.c.b16 %v420, %v419
    %v495 = vpack.c.b16 %v422, %v421
    %v496 = vpack.c.b16 %v424, %v423
    %v497 = vpack.c.b16 %v426, %v425
    %v498 = vpack.c.b16 %v428, %v427
    %v499 = vpack.c.b16 %v430, %v429
    %v500 = vpack.c.b16 %v432, %v431
    %v501 = vpack.c.b16 %v434, %v433
    %v502 = vpack.c.b16 %v436, %v435
    %v503 = vpack.c.b16 %v438, %v437
    %v504 = vpack.c.b16 %v440, %v439
    %569 = vmatprep.subr.bf16.mxu0 0
    %570 = vmatpush1.bf16.msra.mxu0 %v448
    %571 = vmatprep.subr.bf16.mxu0 0
    %572 = vmatpush1.bf16.msra.mxu0 %v447
    %573 = vmatprep.subr.bf16.mxu0 0
    %574 = vmatpush1.bf16.msra.mxu0 %v446
    %575 = vmatprep.subr.bf16.mxu0 0
    %576 = vmatpush1.bf16.msra.mxu0 %v445
    %577 = vmatprep.subr.bf16.mxu0 0
    %578 = vmatpush1.bf16.msra.mxu0 %v444
    %579 = vmatprep.subr.bf16.mxu0 0
    %580 = vmatpush1.bf16.msra.mxu0 %v443
    %581 = vmatprep.subr.bf16.mxu0 0
    %582 = vmatpush1.bf16.msra.mxu0 %v442
    %583 = vmatprep.subr.bf16.mxu0 0
    %584 = vmatpush1.bf16.msra.mxu0 %v441
    %585 = vmatprep.subr.bf16.mxu0 0
    %586 = vmatpush2.bf16.msra.mxu0 %v456
    %587 = vmatprep.subr.bf16.mxu0 0
    %588 = vmatpush2.bf16.msra.mxu0 %v455
    %589 = vmatprep.subr.bf16.mxu0 0
    %590 = vmatpush2.bf16.msra.mxu0 %v454
    %591 = vmatprep.subr.bf16.mxu0 0
    %592 = vmatpush2.bf16.msra.mxu0 %v453
    %593 = vmatprep.subr.bf16.mxu0 0
    %594 = vmatpush2.bf16.msra.mxu0 %v452
    %595 = vmatprep.subr.bf16.mxu0 0
    %596 = vmatpush2.bf16.msra.mxu0 %v451
    %597 = vmatprep.subr.bf16.mxu0 0
    %598 = vmatpush2.bf16.msra.mxu0 %v450
    %599 = vmatprep.subr.bf16.mxu0 0
    %600 = vmatpush2.bf16.msra.mxu0 %v449
    %601 = vmatprep.mubr.bf16.mxu0 %v49
    %602 = vmatmul.mubr.bf16.gmra.mxu0 %v48
    %v603 = vpop.f32.mrf.mxu0
    %v604 = vadd.f32 0.0, %v603
    %v605 = vpop.f32.mrf.mxu0
    %v606 = vpop.f32.mrf.mxu0
    %v607 = vpop.f32.mrf.mxu0
    %608 = vdwg.mxu0
    %609 = vmatprep.subr.bf16.mxu0 0
    %610 = vmatpush1.bf16.msra.mxu0 %v464
    %611 = vmatprep.subr.bf16.mxu0 0
    %612 = vmatpush1.bf16.msra.mxu0 %v463
    %613 = vmatprep.subr.bf16.mxu0 0
    %614 = vmatpush1.bf16.msra.mxu0 %v462
    %615 = vmatprep.subr.bf16.mxu0 0
    %616 = vmatpush1.bf16.msra.mxu0 %v461
    %617 = vmatprep.subr.bf16.mxu0 0
    %618 = vmatpush1.bf16.msra.mxu0 %v460
    %619 = vmatprep.subr.bf16.mxu0 0
    %620 = vmatpush1.bf16.msra.mxu0 %v459
    %621 = vmatprep.subr.bf16.mxu0 0
    %622 = vmatpush1.bf16.msra.mxu0 %v458
    %623 = vmatprep.subr.bf16.mxu0 0
    %624 = vmatpush1.bf16.msra.mxu0 %v457
    %625 = vmatprep.subr.bf16.mxu0 0
    %626 = vmatpush2.bf16.msra.mxu0 %v472
    %627 = vmatprep.subr.bf16.mxu0 0
    %628 = vmatpush2.bf16.msra.mxu0 %v471
    %629 = vmatprep.subr.bf16.mxu0 0
    %630 = vmatpush2.bf16.msra.mxu0 %v470
    %631 = vmatprep.subr.bf16.mxu0 0
    %632 = vmatpush2.bf16.msra.mxu0 %v469
    %633 = vmatprep.subr.bf16.mxu0 0
    %634 = vmatpush2.bf16.msra.mxu0 %v468
    %635 = vmatprep.subr.bf16.mxu0 0
    %636 = vmatpush2.bf16.msra.mxu0 %v467
    %637 = vmatprep.subr.bf16.mxu0 0
    %638 = vmatpush2.bf16.msra.mxu0 %v466
    %639 = vmatprep.subr.bf16.mxu0 0
    %640 = vmatpush2.bf16.msra.mxu0 %v465
    %641 = vmatprep.mubr.bf16.mxu0 %v51
    %642 = vmatmul.mubr.bf16.gmra.mxu0 %v50
    %v643 = vpop.f32.mrf.mxu0
    %v644 = vadd.f32 %v604, %v643
    %v645 = vpop.f32.mrf.mxu0
    %v646 = vpop.f32.mrf.mxu0
    %v647 = vpop.f32.mrf.mxu0
    %648 = vdwg.mxu0
    %649 = vmatprep.subr.bf16.mxu0 0
    %650 = vmatpush1.bf16.msra.mxu0 %v480
    %651 = vmatprep.subr.bf16.mxu0 0
    %652 = vmatpush1.bf16.msra.mxu0 %v479
    %653 = vmatprep.subr.bf16.mxu0 0
    %654 = vmatpush1.bf16.msra.mxu0 %v478
    %655 = vmatprep.subr.bf16.mxu0 0
    %656 = vmatpush1.bf16.msra.mxu0 %v477
    %657 = vmatprep.subr.bf16.mxu0 0
    %658 = vmatpush1.bf16.msra.mxu0 %v476
    %659 = vmatprep.subr.bf16.mxu0 0
    %660 = vmatpush1.bf16.msra.mxu0 %v475
    %661 = vmatprep.subr.bf16.mxu0 0
    %662 = vmatpush1.bf16.msra.mxu0 %v474
    %663 = vmatprep.subr.bf16.mxu0 0
    %664 = vmatpush1.bf16.msra.mxu0 %v473
    %665 = vmatprep.subr.bf16.mxu0 0
    %666 = vmatpush2.bf16.msra.mxu0 %v488
    %667 = vmatprep.subr.bf16.mxu0 0
    %668 = vmatpush2.bf16.msra.mxu0 %v487
    %669 = vmatprep.subr.bf16.mxu0 0
    %670 = vmatpush2.bf16.msra.mxu0 %v486
    %671 = vmatprep.subr.bf16.mxu0 0
    %672 = vmatpush2.bf16.msra.mxu0 %v485
    %673 = vmatprep.subr.bf16.mxu0 0
    %674 = vmatpush2.bf16.msra.mxu0 %v484
    %675 = vmatprep.subr.bf16.mxu0 0
    %676 = vmatpush2.bf16.msra.mxu0 %v483
    %677 = vmatprep.subr.bf16.mxu0 0
    %678 = vmatpush2.bf16.msra.mxu0 %v482
    %679 = vmatprep.subr.bf16.mxu0 0
    %680 = vmatpush2.bf16.msra.mxu0 %v481
    %681 = vmatprep.mubr.bf16.mxu0 %v53
    %682 = vmatmul.mubr.bf16.gmra.mxu0 %v52
    %v683 = vpop.f32.mrf.mxu0
    %v684 = vadd.f32 %v644, %v683
    %v685 = vpop.f32.mrf.mxu0
    %v686 = vpop.f32.mrf.mxu0
    %v687 = vpop.f32.mrf.mxu0
    %688 = vdwg.mxu0
    %689 = vmatprep.subr.bf16.mxu0 0
    %690 = vmatpush1.bf16.msra.mxu0 %v496
    %691 = vmatprep.subr.bf16.mxu0 0
    %692 = vmatpush1.bf16.msra.mxu0 %v495
    %693 = vmatprep.subr.bf16.mxu0 0
    %694 = vmatpush1.bf16.msra.mxu0 %v494
    %695 = vmatprep.subr.bf16.mxu0 0
    %696 = vmatpush1.bf16.msra.mxu0 %v493
    %697 = vmatprep.subr.bf16.mxu0 0
    %698 = vmatpush1.bf16.msra.mxu0 %v492
    %699 = vmatprep.subr.bf16.mxu0 0
    %700 = vmatpush1.bf16.msra.mxu0 %v491
    %701 = vmatprep.subr.bf16.mxu0 0
    %702 = vmatpush1.bf16.msra.mxu0 %v490
    %703 = vmatprep.subr.bf16.mxu0 0
    %704 = vmatpush1.bf16.msra.mxu0 %v489
    %705 = vmatprep.subr.bf16.mxu0 0
    %706 = vmatpush2.bf16.msra.mxu0 %v504
    %707 = vmatprep.subr.bf16.mxu0 0
    %708 = vmatpush2.bf16.msra.mxu0 %v503
    %709 = vmatprep.subr.bf16.mxu0 0
    %710 = vmatpush2.bf16.msra.mxu0 %v502
    %711 = vmatprep.subr.bf16.mxu0 0
    %712 = vmatpush2.bf16.msra.mxu0 %v501
    %713 = vmatprep.subr.bf16.mxu0 0
    %714 = vmatpush2.bf16.msra.mxu0 %v500
    %715 = vmatprep.subr.bf16.mxu0 0
    %716 = vmatpush2.bf16.msra.mxu0 %v499
    %717 = vmatprep.subr.bf16.mxu0 0
    %718 = vmatpush2.bf16.msra.mxu0 %v498
    %719 = vmatprep.subr.bf16.mxu0 0
    %720 = vmatpush2.bf16.msra.mxu0 %v497
    %721 = vmatprep.mubr.bf16.mxu0 %v55
    %722 = vmatmul.mubr.bf16.gmra.mxu0 %v54
    %v723 = vpop.f32.mrf.mxu0
    %v724 = vadd.f32 %v684, %v723
    %v725 = vpop.f32.mrf.mxu0
    %v726 = vpop.f32.mrf.mxu0
    %v727 = vpop.f32.mrf.mxu0
    %728 = vdwg.mxu0
    %v729 = vadd.f32 %v56, %v724
    %730 = vst [vmem:[#allocation2] sm:$0xff] %v729
    // Predicated region
    $region30: #{forward.1} parent=1 // pred_check
      %p731 = pneg %p35
    $region31: #{forward.1} parent=1 // pred_check_branch
      %733 = sbr.rel (%p731) target = $region33
    $region32: #{forward.1} parent=1 // pred_region
      %v734 = vld [vmem:[#allocation2] sm:$0xff]
      %v735 = vld [vmem:[%s2] sm:$0x1]
      %v737 = vlaneseq
      %v738 = vshrl.u32 %v737, 7
      %v739 = vsub.s32 0, %v738
      %v740 = vrot.slane %v735, %v739
      %v742 = vadd.f32 %v734, %v740
      %v743 = vmax.f32 %v742, 0.0
      %v744 = vpack.c.bf16 %v743, %v743
      %v745 = vld [vmem:[%s3] sm:$0xf]
      %v746 = vld [vmem:[%s3 + $0x4] sm:$0xf]
      %v747 = vld [vmem:[%s3 + $0x8] sm:$0xf]
      %v748 = vld [vmem:[%s3 + $0xc] sm:$0xf]
      %v749 = vld [vmem:[%s3 + $0x10] sm:$0xf]
      %v750 = vld [vmem:[%s3 + $0x14] sm:$0xf]
      %v751 = vld [vmem:[%s3 + $0x18] sm:$0xf]
      %v752 = vld [vmem:[%s3 + $0x1c] sm:$0xf]
      %v753 = vld [vmem:[%s3 + $0x20] sm:$0xf]
      %v754 = vld [vmem:[%s3 + $0x24] sm:$0xf]
      %v755 = vld [vmem:[%s3 + $0x28] sm:$0xf]
      %v756 = vld [vmem:[%s3 + $0x2c] sm:$0xf]
      %v757 = vld [vmem:[%s3 + $0x30] sm:$0xf]
      %v758 = vld [vmem:[%s3 + $0x34] sm:$0xf]
      %v759 = vld [vmem:[%s3 + $0x38] sm:$0xf]
      %v760 = vld [vmem:[%s3 + $0x3c] sm:$0xf]
      %v761 = vld [vmem:[%s4] sm:$0x1]
      %v763 = vlaneseq
      %v764 = vshrl.u32 %v763, 7
      %v765 = vsub.s32 0, %v764
      %v766 = vrot.slane %v761, %v765
      %v784 = vunpack.c.l.b16 %v745
      %v785 = vunpack.c.l.b16 %v746
      %v786 = vunpack.c.l.b16 %v747
      %v787 = vunpack.c.l.b16 %v748
      %v788 = vunpack.c.l.b16 %v749
      %v789 = vunpack.c.l.b16 %v750
      %v790 = vunpack.c.l.b16 %v751
      %v791 = vunpack.c.l.b16 %v752
      %v792 = vunpack.c.l.b16 %v753
      %v793 = vunpack.c.l.b16 %v754
      %v794 = vunpack.c.l.b16 %v755
      %v795 = vunpack.c.l.b16 %v756
      %v796 = vunpack.c.l.b16 %v757
      %v797 = vunpack.c.l.b16 %v758
      %v798 = vunpack.c.l.b16 %v759
      %v799 = vunpack.c.l.b16 %v760
      %v800 = vpack.c.b16 %v785, %v784
      %v801 = vpack.c.b16 %v787, %v786
      %v802 = vpack.c.b16 %v789, %v788
      %v803 = vpack.c.b16 %v791, %v790
      %v804 = vpack.c.b16 %v793, %v792
      %v805 = vpack.c.b16 %v795, %v794
      %v806 = vpack.c.b16 %v797, %v796
      %v807 = vpack.c.b16 %v799, %v798
      %816 = vmatprep.subr.bf16.mxu0 0
      %817 = vmatpush1.bf16.msra.mxu0 %v807
      %818 = vmatprep.subr.bf16.mxu0 0
      %819 = vmatpush1.bf16.msra.mxu0 %v806
      %820 = vmatprep.subr.bf16.mxu0 0
      %821 = vmatpush1.bf16.msra.mxu0 %v805
      %822 = vmatprep.subr.bf16.mxu0 0
      %823 = vmatpush1.bf16.msra.mxu0 %v804
      %824 = vmatprep.subr.bf16.mxu0 0
      %825 = vmatpush1.bf16.msra.mxu0 %v803
      %826 = vmatprep.subr.bf16.mxu0 0
      %827 = vmatpush1.bf16.msra.mxu0 %v802
      %828 = vmatprep.subr.bf16.mxu0 0
      %829 = vmatpush1.bf16.msra.mxu0 %v801
      %830 = vmatprep.subr.bf16.mxu0 0
      %831 = vmatpush1.bf16.msra.mxu0 %v800
      %832 = vmatprep.subr.bf16.mxu0 0
      %833 = vmatpush2.bf16.msra.mxu0 0
      %834 = vmatprep.subr.bf16.mxu0 0
      %835 = vmatpush2.bf16.msra.mxu0 0
      %836 = vmatprep.subr.bf16.mxu0 0
      %837 = vmatpush2.bf16.msra.mxu0 0
      %838 = vmatprep.subr.bf16.mxu0 0
      %839 = vmatpush2.bf16.msra.mxu0 0
      %840 = vmatprep.subr.bf16.mxu0 0
      %841 = vmatpush2.bf16.msra.mxu0 0
      %842 = vmatprep.subr.bf16.mxu0 0
      %843 = vmatpush2.bf16.msra.mxu0 0
      %844 = vmatprep.subr.bf16.mxu0 0
      %845 = vmatpush2.bf16.msra.mxu0 0
      %846 = vmatprep.subr.bf16.mxu0 0
      %847 = vmatpush2.bf16.msra.mxu0 0
      %848 = vmatprep.mubr.bf16.mxu0 0
      %849 = vmatmul.mubr.bf16.gmra.mxu0 %v744
      %v850 = vpop.f32.mrf.mxu0
      %v851 = vadd.f32 %v766, %v850
      %v852 = vpop.f32.mrf.mxu0
      %v853 = vpop.f32.mrf.mxu0
      %v854 = vpop.f32.mrf.mxu0
      %855 = vdwg.mxu0
      %v856 = vpack.c.bf16 %v851, %v851
      %857 = vst [vmem:[%s5] sm:$0xf] %v856
    $region33: #{forward.1} parent=1 // pred_fallthru
      _
    // Predicated region
    $region34: #{forward.1} parent=1 // pred_check
      _
    $region35: #{forward.1} parent=1 // pred_check_branch
      %859 = sbr.rel (0) target = $region37
    $region36: #{forward.1} parent=1 // pred_region
      _
    $region37: #{forward.1} parent=1 // pred_fallthru
      _
    // Predicated region
    $region38: #{forward.1} parent=1 // pred_check
      _
    $region39: #{forward.1} parent=1 // pred_check_branch
      %861 = sbr.rel (0) target = $region41
    $region40: #{forward.1} parent=1 // pred_region
      _
    $region41: #{forward.1} parent=1 // pred_fallthru
      _
    %862 = vsyncpa [#allocation4], 1

</llo_original>
